<compile_context>
chip_gen: v5e
topology: v5e:2x2
jax: 0.10.0
libtpu: 0.0.40
codegen_flags: <defaults>
</compile_context>

<pallas_src>
import functools

import jax
import jax.numpy as jnp
from jax.experimental import pallas as pl
from jax.experimental.pallas import tpu as pltpu


def _round_up(n, m):
    return ((n + m - 1) // m) * m


def _linear_kernel(x_ref, w_ref, b_ref, o_ref):
    # (TM, K) @ (K, N) on the MXU, f32 accumulation; bias add on the VPU.
    acc = jnp.dot(x_ref[...], w_ref[...], preferred_element_type=jnp.float32)
    o_ref[...] = (acc + b_ref[...]).astype(o_ref.dtype)


def _default_tm_cap():
    # Generation-aware batch-tile cap, kept under each generation's *default*
    # scoped VMEM so no vmem_limit_bytes override is required:
    #   v6e / v7x (32 MiB default scoped): tm=4096 -> ~20 MiB (x dbl-buf + padded out)
    #   v5e / unknown (16 MiB default):    tm=2048 -> ~10 MiB
    try:
        kind = jax.devices()[0].device_kind.lower()
    except Exception:
        return 2048
    if "v6" in kind or "v7" in kind or "7x" in kind:
        return 4096
    return 2048


@functools.partial(jax.jit, static_argnames=("tm_cap",))
def _forward_impl(x, weight, bias, *, tm_cap):
    B, K = x.shape
    N = weight.shape[0]

    # One-time 20 KB weight transpose OUTSIDE the kernel: the MXU then consumes a
    # plain (K, N) RHS every grid step with zero per-step cross-lane work.
    w_t = weight.T                                   # (500, 10)
    b2d = bias.reshape(1, N).astype(jnp.float32)     # (1, 10)

    # Batch tile: multiple of 8 (f32 sublane), capped per generation, and sized so
    # large batches yield >= 4 grid steps (>= 2 per TensorCore on v7x).
    tm = max(8, min(tm_cap, _round_up(pl.cdiv(B, 4), 8)))
    grid = (pl.cdiv(B, tm),)

    out_dtype = x.dtype
    cost = pl.CostEstimate(
        flops=2 * B * K * N,
        transcendentals=0,
        bytes_accessed=(x.dtype.itemsize * B * K
                        + weight.dtype.itemsize * K * N
                        + bias.dtype.itemsize * N
                        + jnp.dtype(out_dtype).itemsize * B * N),
    )

    return pl.pallas_call(
        _linear_kernel,
        out_shape=jax.ShapeDtypeStruct((B, N), out_dtype),
        grid_spec=pltpu.PrefetchScalarGridSpec(
            num_scalar_prefetch=0,
            grid=grid,
            in_specs=[
                pl.BlockSpec((tm, K), lambda i: (i, 0)),   # streamed batch tiles
                pl.BlockSpec((K, N), lambda i: (0, 0)),    # VMEM-resident weight (K, N)
                pl.BlockSpec((1, N), lambda i: (0, 0)),    # VMEM-resident bias
            ],
            out_specs=pl.BlockSpec((tm, N), lambda i: (i, 0)),
        ),
        compiler_params=pltpu.CompilerParams(
            dimension_semantics=("parallel",),
        ),
        cost_estimate=cost,
    )(x, w_t, b2d)


def lenet_classifier_forward(x, weight, bias, *, tm_cap=None):
    """LeNetClassifier.forward: out = x @ weight.T + bias.

    x: (B, 500) f32; weight: (10, 500) f32 (PyTorch nn.Linear layout); bias: (10,).
    """
    if tm_cap is None:
        tm_cap = _default_tm_cap()
    return _forward_impl(x, weight, bias, tm_cap=tm_cap)


if __name__ == "__main__":
    key = jax.random.PRNGKey(0)
    k_x, k_w, k_b, k_x2 = jax.random.split(key, 4)

    B, IN, OUT = 2, 500, 10

    # Deterministic parameter init mimicking nn.Linear's U(-1/sqrt(in), 1/sqrt(in)).
    bound = 1.0 / (IN ** 0.5)
    weight = jax.random.uniform(k_w, (OUT, IN), jnp.float32, -bound, bound)
    bias = jax.random.uniform(k_b, (OUT,), jnp.float32, -bound, bound)
    x = jax.random.normal(k_x, (B, IN), jnp.float32)

    # 1) Default path -- exact module semantics (partial batch tile: B=2 < tm=8).
    out = jax.block_until_ready(lenet_classifier_forward(x, weight, bias))
    ref = x @ weight.T + bias
    assert out.shape == (B, OUT)
    assert jnp.allclose(out, ref, atol=1e-5, rtol=1e-5)

    # 2) Multi-tile path: small tm_cap forces a 4-step grid, exercising batch
    #    streaming with the weight/bias held VMEM-resident across tiles.
    x_big = jax.random.normal(k_x2, (64, IN), jnp.float32)
    out_big = jax.block_until_ready(
        lenet_classifier_forward(x_big, weight, bias, tm_cap=16))
    ref_big = x_big @ weight.T + bias
    assert jnp.allclose(out_big, ref_big, atol=1e-5, rtol=1e-5)

    print("KERNEL_OK")
</pallas_src>

<mosaic_0001>
module attributes {stable_mosaic.version = 11 : i64} {
  func.func @_linear_kernel(%arg0: i32, %arg1: memref<8x500xf32, #tpu.memory_space<vmem>>, %arg2: memref<500x10xf32, #tpu.memory_space<vmem>>, %arg3: memref<1x10xf32, #tpu.memory_space<vmem>>, %arg4: memref<8x10xf32, #tpu.memory_space<vmem>>) attributes {dimension_semantics = [#tpu.dimension_semantics<parallel>], iteration_bounds = array<i64: 1>, scalar_prefetch = 0 : i64, scratch_operands = 0 : i64, tpu.core_type = #tpu.core_type<tc>, window_params = [{transform_indices = @transform_0, window_bounds = array<i64: 8, 500>}, {pipeline_mode = #tpu.pipeline_mode<synchronous>, transform_indices = @transform_1, window_bounds = array<i64: 500, 10>}, {pipeline_mode = #tpu.pipeline_mode<synchronous>, transform_indices = @transform_2, window_bounds = array<i64: 1, 10>}, {transform_indices = @transform_3, window_bounds = array<i64: 8, 10>}]} {
    %c0 = arith.constant 0 : index
    %c0_0 = arith.constant 0 : index
    %0 = vector.load %arg1[%c0, %c0_0] : memref<8x500xf32, #tpu.memory_space<vmem>>, vector<8x500xf32>
    %c0_1 = arith.constant 0 : index
    %c0_2 = arith.constant 0 : index
    %1 = vector.load %arg2[%c0_1, %c0_2] : memref<500x10xf32, #tpu.memory_space<vmem>>, vector<500x10xf32>
    %cst = arith.constant dense<0.000000e+00> : vector<8x10xf32>
    %2 = tpu.matmul %0, %1, %cst {dimension_numbers = #tpu.dot_dimension_numbers<[1], [0], [0], [1], [0, 0, 1, 1], [], []>} : vector<8x500xf32>, vector<500x10xf32>, vector<8x10xf32> -> vector<8x10xf32>
    %c0_3 = arith.constant 0 : index
    %c0_4 = arith.constant 0 : index
    %3 = vector.load %arg3[%c0_3, %c0_4] : memref<1x10xf32, #tpu.memory_space<vmem>>, vector<1x10xf32>
    %4 = vector.broadcast %3 : vector<1x10xf32> to vector<8x10xf32>
    %5 = arith.addf %2, %4 : vector<8x10xf32>
    %c0_5 = arith.constant 0 : index
    %c0_6 = arith.constant 0 : index
    %6 = vector.load %arg4[%c0_5, %c0_6] : memref<8x10xf32, #tpu.memory_space<vmem>>, vector<8x10xf32>
    tpu.vector_store %arg4[%c0_5, %c0_6], %5 {strides = array<i32>} : memref<8x10xf32, #tpu.memory_space<vmem>>, vector<8x10xf32>,
    return
  }
  func.func @transform_0(%arg0: i32) -> (i32, i32) {
    %c0_i32 = arith.constant 0 : i32
    %c0_i32_0 = arith.constant 0 : i32
    return %arg0, %c0_i32 : i32, i32
  }
  func.func @transform_1(%arg0: i32) -> (i32, i32) {
    %c0_i32 = arith.constant 0 : i32
    %c0_i32_0 = arith.constant 0 : i32
    %c0_i32_1 = arith.constant 0 : i32
    return %c0_i32, %c0_i32_0 : i32, i32
  }
  func.func @transform_2(%arg0: i32) -> (i32, i32) {
    %c0_i32 = arith.constant 0 : i32
    %c0_i32_0 = arith.constant 0 : i32
    %c0_i32_1 = arith.constant 0 : i32
    return %c0_i32, %c0_i32_0 : i32, i32
  }
  func.func @transform_3(%arg0: i32) -> (i32, i32) {
    %c0_i32 = arith.constant 0 : i32
    %c0_i32_0 = arith.constant 0 : i32
    return %arg0, %c0_i32 : i32, i32
  }
}

</mosaic_0001>

<llo_original>
// kernel: _forward_impl.1
$region0: #{_forward_impl.1}
  #allocation0 [shape = 'u32[]', space=smem, size = 0x4, offset = 0x4, fixed_abs, tag = 'smem constant byte address 0x4 - core index']
  #allocation1 [shape = 'u32[72,128]{1,0:T(1,128)}', space=vmem, size = 0x9000, scoped, tag = 'internal scratch']
  %s0 = inlined_call_operand.vmem [shape: f32[2,500], index: 0, kind: input, shape index: {}]
  %s1 = inlined_call_operand.vmem [shape: f32[500,10], index: 1, kind: input, shape index: {}]
  %s2 = inlined_call_operand.vmem [shape: f32[1,10], index: 2, kind: input, shape index: {}]
  %s3 = inlined_call_operand.hbm [shape: f32[2,10], index: 3, kind: output, shape index: {}]
  %s4 = sld [smem:[#allocation0]]
  $region22: #{_forward_impl.1} parent=0
    _
  %s6 = ssub.s32 1, %s4
  %s7 = scalar_select 0, %s6, %s4
  $region1: #{_forward_impl.1} parent=0
    #allocation2 [shape = 'u8[4096]{0}', space=vmem, size = 0x1000, scoped, tag = 'output window, operand 0, single buffered']
    #allocation3 [shape = 's32[1]{0}', space=sflag, size = 0x4, scoped, tag = 'scoped memory for _forward_impl.1']
    %8 = vsyncpa [#allocation3], 0
    // Predicated region
    $region2: #{_forward_impl.1} parent=1 // pred_check
      _
    $region3: #{_forward_impl.1} parent=1 // pred_check_branch
      %10 = sbr.rel (0) target = $region5
    $region4: #{_forward_impl.1} parent=1 // pred_region
      _
    $region5: #{_forward_impl.1} parent=1 // pred_fallthru
      _
    // Predicated region
    $region6: #{_forward_impl.1} parent=1 // pred_check
      _
    $region7: #{_forward_impl.1} parent=1 // pred_check_branch
      %12 = sbr.rel (0) target = $region9
    $region8: #{_forward_impl.1} parent=1 // pred_region
      _
    $region9: #{_forward_impl.1} parent=1 // pred_fallthru
      _
    // Predicated region
    $region10: #{_forward_impl.1} parent=1 // pred_check
      _
    $region11: #{_forward_impl.1} parent=1 // pred_check_branch
      %14 = sbr.rel (0) target = $region13
    $region12: #{_forward_impl.1} parent=1 // pred_region
      _
    $region13: #{_forward_impl.1} parent=1 // pred_fallthru
      _
    %v15 = vld [vmem:[%s0] sm:$0xff]
    %v16 = vld [vmem:[%s0 + $0x8] sm:$0xff]
    %v17 = vld [vmem:[%s0 + $0x10] sm:$0xff]
    %v18 = vld [vmem:[%s0 + $0x18] sm:$0xff]
    %v19 = vld [vmem:[%s1] sm:$0xff]
    %v20 = vld [vmem:[%s1 + $0x8] sm:$0xff]
    %v21 = vld [vmem:[%s1 + $0x10] sm:$0xff]
    %v22 = vld [vmem:[%s1 + $0x18] sm:$0xff]
    %v23 = vld [vmem:[%s1 + $0x20] sm:$0xff]
    %v24 = vld [vmem:[%s1 + $0x28] sm:$0xff]
    %v25 = vld [vmem:[%s1 + $0x30] sm:$0xff]
    %v26 = vld [vmem:[%s1 + $0x38] sm:$0xff]
    %v27 = vld [vmem:[%s1 + $0x40] sm:$0xff]
    %v28 = vld [vmem:[%s1 + $0x48] sm:$0xff]
    %v29 = vld [vmem:[%s1 + $0x50] sm:$0xff]
    %v30 = vld [vmem:[%s1 + $0x58] sm:$0xff]
    %v31 = vld [vmem:[%s1 + $0x60] sm:$0xff]
    %v32 = vld [vmem:[%s1 + $0x68] sm:$0xff]
    %v33 = vld [vmem:[%s1 + $0x70] sm:$0xff]
    %v34 = vld [vmem:[%s1 + $0x78] sm:$0xff]
    %v35 = vld [vmem:[%s1 + $0x80] sm:$0xff]
    %v36 = vld [vmem:[%s1 + $0x88] sm:$0xff]
    %v37 = vld [vmem:[%s1 + $0x90] sm:$0xff]
    %v38 = vld [vmem:[%s1 + $0x98] sm:$0xff]
    %v39 = vld [vmem:[%s1 + $0xa0] sm:$0xff]
    %v40 = vld [vmem:[%s1 + $0xa8] sm:$0xff]
    %v41 = vld [vmem:[%s1 + $0xb0] sm:$0xff]
    %v42 = vld [vmem:[%s1 + $0xb8] sm:$0xff]
    %v43 = vld [vmem:[%s1 + $0xc0] sm:$0xff]
    %v44 = vld [vmem:[%s1 + $0xc8] sm:$0xff]
    %v45 = vld [vmem:[%s1 + $0xd0] sm:$0xff]
    %v46 = vld [vmem:[%s1 + $0xd8] sm:$0xff]
    %v47 = vld [vmem:[%s1 + $0xe0] sm:$0xff]
    %v48 = vld [vmem:[%s1 + $0xe8] sm:$0xff]
    %v49 = vld [vmem:[%s1 + $0xf0] sm:$0xff]
    %v50 = vld [vmem:[%s1 + $0xf8] sm:$0xff]
    %v51 = vld [vmem:[%s1 + $0x100] sm:$0xff]
    %v52 = vld [vmem:[%s1 + $0x108] sm:$0xff]
    %v53 = vld [vmem:[%s1 + $0x110] sm:$0xff]
    %v54 = vld [vmem:[%s1 + $0x118] sm:$0xff]
    %v55 = vld [vmem:[%s1 + $0x120] sm:$0xff]
    %v56 = vld [vmem:[%s1 + $0x128] sm:$0xff]
    %v57 = vld [vmem:[%s1 + $0x130] sm:$0xff]
    %v58 = vld [vmem:[%s1 + $0x138] sm:$0xff]
    %v59 = vld [vmem:[%s1 + $0x140] sm:$0xff]
    %v60 = vld [vmem:[%s1 + $0x148] sm:$0xff]
    %v61 = vld [vmem:[%s1 + $0x150] sm:$0xff]
    %v62 = vld [vmem:[%s1 + $0x158] sm:$0xff]
    %v63 = vld [vmem:[%s1 + $0x160] sm:$0xff]
    %v64 = vld [vmem:[%s1 + $0x168] sm:$0xff]
    %v65 = vld [vmem:[%s1 + $0x170] sm:$0xff]
    %v66 = vld [vmem:[%s1 + $0x178] sm:$0xff]
    %v67 = vld [vmem:[%s1 + $0x180] sm:$0xff]
    %v68 = vld [vmem:[%s1 + $0x188] sm:$0xff]
    %v69 = vld [vmem:[%s1 + $0x190] sm:$0xff]
    %v70 = vld [vmem:[%s1 + $0x198] sm:$0xff]
    %v71 = vld [vmem:[%s1 + $0x1a0] sm:$0xff]
    %v72 = vld [vmem:[%s1 + $0x1a8] sm:$0xff]
    %v73 = vld [vmem:[%s1 + $0x1b0] sm:$0xff]
    %v74 = vld [vmem:[%s1 + $0x1b8] sm:$0xff]
    %v75 = vld [vmem:[%s1 + $0x1c0] sm:$0xff]
    %v76 = vld [vmem:[%s1 + $0x1c8] sm:$0xff]
    %v77 = vld [vmem:[%s1 + $0x1d0] sm:$0xff]
    %v78 = vld [vmem:[%s1 + $0x1d8] sm:$0xff]
    %v79 = vld [vmem:[%s1 + $0x1e0] sm:$0xff]
    %v80 = vld [vmem:[%s1 + $0x1e8] sm:$0xff]
    %v81 = vld [vmem:[%s1 + $0x1f0] sm:$0xf]
    %v82 = vld [vmem:[%s2] sm:$0x1]
    %v84 = vperm.slane %v82, 0
    %90 = vst [vmem:[#allocation1] ss:$4 sm:$0xff] %v15
    %s91 = scalar_lea.vmem [#allocation1], 1
    %92 = vst [vmem:[%s91] ss:$4 sm:$0xff] %v16
    %s93 = scalar_lea.vmem [#allocation1], 2
    %94 = vst [vmem:[%s93] ss:$4 sm:$0xff] %v17
    %s95 = scalar_lea.vmem [#allocation1], 3
    %96 = vst [vmem:[%s95] ss:$4 sm:$0xff] %v18
    %v97 = vld.sshfl [vmem:[#allocation1] sm:$0xff pattern:$0x73625140]
    %v98 = vld.sshfl [vmem:[#allocation1 + $0x8] sm:$0xff pattern:$0x73625140]
    %v99 = vld.sshfl [vmem:[#allocation1 + $0x10] sm:$0xff pattern:$0x73625140]
    %v100 = vld.sshfl [vmem:[#allocation1 + $0x18] sm:$0xff pattern:$0x73625140]
    %vm104 = vcmask 949248
    %v105 = vsel %vm104, %v100, 0
    %vm107 = vcmask 1043456
    %v109 = vsel %vm107, %v81, 0
    %111 = vmatpush.msra.mxu0 %v34
    %112 = vmatpush.msra.mxu0 %v33
    %113 = vmatpush.msra.mxu0 %v32
    %114 = vmatpush.msra.mxu0 %v31
    %115 = vmatpush.msra.mxu0 %v30
    %116 = vmatpush.msra.mxu0 %v29
    %117 = vmatpush.msra.mxu0 %v28
    %118 = vmatpush.msra.mxu0 %v27
    %119 = vmatpush.msra.mxu0 %v26
    %120 = vmatpush.msra.mxu0 %v25
    %121 = vmatpush.msra.mxu0 %v24
    %122 = vmatpush.msra.mxu0 %v23
    %123 = vmatpush.msra.mxu0 %v22
    %124 = vmatpush.msra.mxu0 %v21
    %125 = vmatpush.msra.mxu0 %v20
    %126 = vmatpush.msra.mxu0 %v19
    %127 = vmatmul.f32.gmra.mxu0 %v97
    %v128 = vpop.f32.mrf.mxu0
    %v129 = vadd.f32 %v84, %v128
    %130 = vdwg.mxu0
    %131 = vmatpush.msra.mxu0 %v50
    %132 = vmatpush.msra.mxu0 %v49
    %133 = vmatpush.msra.mxu0 %v48
    %134 = vmatpush.msra.mxu0 %v47
    %135 = vmatpush.msra.mxu0 %v46
    %136 = vmatpush.msra.mxu0 %v45
    %137 = vmatpush.msra.mxu0 %v44
    %138 = vmatpush.msra.mxu0 %v43
    %139 = vmatpush.msra.mxu0 %v42
    %140 = vmatpush.msra.mxu0 %v41
    %141 = vmatpush.msra.mxu0 %v40
    %142 = vmatpush.msra.mxu0 %v39
    %143 = vmatpush.msra.mxu0 %v38
    %144 = vmatpush.msra.mxu0 %v37
    %145 = vmatpush.msra.mxu0 %v36
    %146 = vmatpush.msra.mxu0 %v35
    %147 = vmatmul.f32.gmra.mxu0 %v98
    %v148 = vpop.f32.mrf.mxu0
    %v149 = vadd.f32 %v129, %v148
    %150 = vdwg.mxu0
    %151 = vmatpush.msra.mxu0 %v66
    %152 = vmatpush.msra.mxu0 %v65
    %153 = vmatpush.msra.mxu0 %v64
    %154 = vmatpush.msra.mxu0 %v63
    %155 = vmatpush.msra.mxu0 %v62
    %156 = vmatpush.msra.mxu0 %v61
    %157 = vmatpush.msra.mxu0 %v60
    %158 = vmatpush.msra.mxu0 %v59
    %159 = vmatpush.msra.mxu0 %v58
    %160 = vmatpush.msra.mxu0 %v57
    %161 = vmatpush.msra.mxu0 %v56
    %162 = vmatpush.msra.mxu0 %v55
    %163 = vmatpush.msra.mxu0 %v54
    %164 = vmatpush.msra.mxu0 %v53
    %165 = vmatpush.msra.mxu0 %v52
    %166 = vmatpush.msra.mxu0 %v51
    %167 = vmatmul.f32.gmra.mxu0 %v99
    %v168 = vpop.f32.mrf.mxu0
    %v169 = vadd.f32 %v149, %v168
    %170 = vdwg.mxu0
    %171 = vmatpush.msra.mxu0 0.0
    %172 = vmatpush.msra.mxu0 %v109
    %173 = vmatpush.msra.mxu0 %v80
    %174 = vmatpush.msra.mxu0 %v79
    %175 = vmatpush.msra.mxu0 %v78
    %176 = vmatpush.msra.mxu0 %v77
    %177 = vmatpush.msra.mxu0 %v76
    %178 = vmatpush.msra.mxu0 %v75
    %179 = vmatpush.msra.mxu0 %v74
    %180 = vmatpush.msra.mxu0 %v73
    %181 = vmatpush.msra.mxu0 %v72
    %182 = vmatpush.msra.mxu0 %v71
    %183 = vmatpush.msra.mxu0 %v70
    %184 = vmatpush.msra.mxu0 %v69
    %185 = vmatpush.msra.mxu0 %v68
    %186 = vmatpush.msra.mxu0 %v67
    %187 = vmatmul.f32.gmra.mxu0 %v105
    %v188 = vpop.f32.mrf.mxu0
    %v189 = vadd.f32 %v169, %v188
    %190 = vdwg.mxu0
    %vm191 = vcmask 80896
    %192 = vst.msk [vmem:[#allocation2] sm:$0xff] %vm191, %v189
    // Predicated region
    $region14: #{_forward_impl.1} parent=1 // pred_check
      _
    $region15: #{_forward_impl.1} parent=1 // pred_check_branch
      %194 = sbr.rel (0) target = $region17
    $region16: #{_forward_impl.1} parent=1 // pred_region
      %196 = vsyncadd [#allocation3], 96
      %s197 = sshll.u32 [#allocation2], 4
      %s198 = int_to_ptr.vmem [resolvable:$true] %s197
      %s199 = sshll.u32 %s3, 4
      %s200 = int_to_ptr.hbm [resolvable:$true] %s199
      %205 = dma.vmem_to_hbm [thread:$0]  %s198, 32, %s200, [#allocation3], 32, 32, 2
    $region17: #{_forward_impl.1} parent=1 // pred_fallthru
      _
    // Predicated region
    $region18: #{_forward_impl.1} parent=1 // pred_check
      _
    $region19: #{_forward_impl.1} parent=1 // pred_check_branch
      %207 = sbr.rel (0) target = $region21
    $region20: #{_forward_impl.1} parent=1 // pred_region
      %209 = dma.done [#allocation3], 128
    $region21: #{_forward_impl.1} parent=1 // pred_fallthru
      _
    %210 = vsyncpa [#allocation3], 1

</llo_original>
